<compile_context>
chip_gen: v7x
topology: tpu7x:2x2x1
jax: 0.10.0
libtpu: 0.0.40
codegen_flags: <defaults>
</compile_context>

<pallas_src>
import jax
import jax.numpy as jnp
import numpy as np
from jax.experimental import pallas as pl
from jax.experimental.pallas import tpu as pltpu


# ----------------------------------------------------------------------------
# Hardware / tiling helpers
# ----------------------------------------------------------------------------

def _tpu_budget():
    """Returns (vmem_capacity_bytes, two_tensorcores, per-block byte budget)."""
    vmem_cap = 64 << 20                       # conservative default (v7x per-TC)
    try:
        info = pltpu.get_tpu_info()
        vmem_cap = int(getattr(info, "vmem_capacity_bytes", vmem_cap))
    except Exception:
        pass
    # TODO(synk): no stable TensorCore-count query in pltpu; infer the 2-TC v7x
    # generation from its smaller (64 MiB) per-core VMEM.
    two_cores = vmem_cap <= (64 << 20)
    # 2 input + 2 output double-buffered blocks must fit with headroom: spend
    # ~70% of capacity on them; cap one block at 16 MiB (v5e/v6e) / ~11 MiB (v7x).
    target_block_bytes = min(16 << 20, max(1 << 20, (vmem_cap * 7 // 10) // 4))
    return vmem_cap, two_cores, target_block_bytes


def _choose_flatten(h, w, d):
    """Pick (rows_per_channel, lane_dim) so the flattened last dim is a multiple
    of 128 (lane-dense loads/stores) whenever the shape allows."""
    for rpc, l in ((1, h * w * d), (h, w * d), (h * w, d)):
        if l % 128 == 0:
            return rpc, l
    return 1, h * w * d            # not lane-dense; correct but masked stores


def _divisors(n):
    ds, i = set(), 1
    while i * i <= n:
        if n % i == 0:
            ds.add(i)
            ds.add(n // i)
        i += 1
    return sorted(ds)


def _largest_divisor(n, limit, multiple_of):
    cands = [k for k in _divisors(n)
             if k <= limit and (k % multiple_of == 0 or k == n)]
    return max(cands) if cands else None


def _choose_batches_per_block(b, group_rows, l, itemsize, target_block_bytes,
                              two_cores):
    """Whole batches per block for the fused single-pass kernel, or None if a
    single batch does not fit the budget (caller uses the two-pass path)."""
    sub_pack = 8 * max(1, 4 // itemsize)      # full packed-sublane occupancy
    per_batch = group_rows * l * itemsize
    divisors = [n for n in range(1, b + 1) if b % n == 0]
    legal = [n for n in divisors if (n * group_rows) % 8 == 0 or n == b]
    fitting = [n for n in legal if n * per_batch <= target_block_bytes]
    if not fitting:
        return None

    def pick(cands):
        if two_cores:
            # Prefer an even step count so both v7x TensorCores get equal work.
            even = [n for n in cands if (b // n) >= 2 and (b // n) % 2 == 0]
            if even:
                return max(even)
        return max(cands)

    packed = [n for n in fitting if (n * group_rows) % sub_pack == 0]
    return pick(packed) if packed else pick(fitting)


def _choose_2d_block(total_rows, l, itemsize, target_block_bytes):
    """(row_block, lane_block) for the two-pass streaming kernels."""
    sub_pack = 8 * max(1, 4 // itemsize)
    l_cands = sorted({k for k in _divisors(l) if k % 128 == 0} | {l},
                     reverse=True)
    for lb in l_cands:
        limit = max(1, target_block_bytes // (lb * itemsize))
        for m in dict.fromkeys((sub_pack, 8)):
            rb = _largest_divisor(total_rows, limit, m)
            if rb is not None:
                return rb, lb
    # TODO(synk): pathological shapes (huge prime lane dim) can exceed the
    # budget here; fall back to the smallest legal tiles for correctness.
    return (_largest_divisor(total_rows, total_rows, 8) or total_rows,
            min(l_cands))


# ----------------------------------------------------------------------------
# Shared in-kernel channel MLP: relu(y @ w1.T) @ w2.T, no in-kernel transposes.
# ----------------------------------------------------------------------------

def _channel_mlp(y, w1v, w2v, c):
    if c >= 128:
        # Real CALayer channel counts: MXU, contracting dims given explicitly.
        hidden = jnp.maximum(
            jax.lax.dot_general(y, w1v, (((1,), (1,)), ((), ())),
                                preferred_element_type=jnp.float32), 0.0)
        return jax.lax.dot_general(hidden, w2v, (((1,), (1,)), ((), ())),
                                   preferred_element_type=jnp.float32)
    # Tiny C: an MXU tile would be >95% padding, keep it on the VPU.
    hidden = jnp.maximum(jnp.sum(y[:, None, :] * w1v[None, :, :], axis=-1), 0.0)
    return jnp.sum(hidden[:, None, :] * w2v[None, :, :], axis=-1)


# ----------------------------------------------------------------------------
# Fused single-pass path (whole batches resident per block)
# ----------------------------------------------------------------------------

def _ca_layer_single_pass(xf, w1, w2, *, b, c, rpc, l, bpb, inv_hw, vmem_cap):
    itemsize = jnp.dtype(xf.dtype).itemsize
    cr = w1.shape[0]
    rows = bpb * c * rpc
    grid = (b // bpb,)
    block_bytes = rows * l * itemsize
    weight_bytes = 2 * c * cr * jnp.dtype(w1.dtype).itemsize
    vmem_limit = int(min(vmem_cap,
                         max(32 << 20,
                             4 * block_bytes + 4 * weight_bytes + (4 << 20))))

    def kernel(x_ref, w1_ref, w2_ref, o_ref):
        # f32-accumulated sum of squares over the lane dim; no full-tile f32 copy.
        sq = jnp.sum(jnp.square(x_ref[...].astype(jnp.float32)), axis=-1,
                     keepdims=True)                                  # (rows, 1)
        if rpc == 1:
            y = sq.reshape(bpb, c) * inv_hw                          # (bpb, c)
        else:
            y = jnp.sum(sq.reshape(bpb, c, rpc), axis=-1) * inv_hw   # (bpb, c)
        scale = jax.nn.sigmoid(
            _channel_mlp(y, w1_ref[...].astype(jnp.float32),
                         w2_ref[...].astype(jnp.float32), c))        # (bpb, c)
        if rpc == 1:
            scale_rows = scale.reshape(rows, 1)
        else:
            scale_rows = jnp.broadcast_to(scale[:, :, None],
                                          (bpb, c, rpc)).reshape(rows, 1)
        # Re-read the resident tile in its native dtype; multiply in that dtype.
        o_ref[...] = x_ref[...] * scale_rows.astype(o_ref.dtype)

    cost = pl.CostEstimate(
        flops=int(3 * b * c * rpc * l + 4 * b * c * cr),
        transcendentals=int(b * c),
        bytes_accessed=int(2 * b * c * rpc * l * itemsize + 2 * c * cr * 4),
    )

    return pl.pallas_call(
        kernel,
        out_shape=jax.ShapeDtypeStruct(xf.shape, xf.dtype),
        grid=grid,
        in_specs=[
            pl.BlockSpec((rows, l), lambda i: (i, 0)),
            pl.BlockSpec((cr, c), lambda i: (0, 0)),    # weights stay resident
            pl.BlockSpec((c, cr), lambda i: (0, 0)),
        ],
        out_specs=pl.BlockSpec((rows, l), lambda i: (i, 0)),
        compiler_params=pltpu.CompilerParams(
            dimension_semantics=("parallel",),
            vmem_limit_bytes=vmem_limit),
        cost_estimate=cost,
    )(xf, w1, w2)


# ----------------------------------------------------------------------------
# Two-pass fallback: HWD-tiled sum-of-squares pass + streaming scale pass.
# Used when a single batch exceeds the per-block VMEM budget.
# ----------------------------------------------------------------------------

def _ca_layer_two_pass(xf, w1, w2, *, b, c, rpc, l, inv_hw, vmem_cap,
                       target_block_bytes):
    total_rows = xf.shape[0]
    itemsize = jnp.dtype(xf.dtype).itemsize
    rb, lb = _choose_2d_block(total_rows, l, itemsize, target_block_bytes)
    grid = (total_rows // rb, l // lb)
    xblock_bytes = rb * lb * itemsize

    # Pass 1: per-row sum of squares; the HWD reduction axis is last ("arbitrary").
    def sumsq_kernel(x_ref, s_ref):
        @pl.when(pl.program_id(1) == 0)
        def _():
            s_ref[...] = jnp.zeros_like(s_ref)
        s_ref[...] += jnp.sum(jnp.square(x_ref[...].astype(jnp.float32)),
                              axis=-1, keepdims=True)

    sumsq = pl.pallas_call(
        sumsq_kernel,
        out_shape=jax.ShapeDtypeStruct((total_rows, 1), jnp.float32),
        grid=grid,
        in_specs=[pl.BlockSpec((rb, lb), lambda i, j: (i, j))],
        out_specs=pl.BlockSpec((rb, 1), lambda i, j: (i, 0)),
        compiler_params=pltpu.CompilerParams(
            dimension_semantics=("parallel", "arbitrary"),
            vmem_limit_bytes=int(min(vmem_cap,
                                     max(32 << 20,
                                         2 * xblock_bytes + (4 << 20))))),
    )(xf)

    # Tiny kernel: regroup rows -> (b, c), pool by 1/(h*w), channel MLP, sigmoid.
    def scale_kernel(s_ref, w1_ref, w2_ref, o_ref):
        y = jnp.sum(s_ref[...], axis=-1).reshape(b, c) * inv_hw
        scale = jax.nn.sigmoid(
            _channel_mlp(y, w1_ref[...].astype(jnp.float32),
                         w2_ref[...].astype(jnp.float32), c))
        o_ref[...] = scale.reshape(b * c, 1)

    scale_bc = pl.pallas_call(
        scale_kernel,
        out_shape=jax.ShapeDtypeStruct((b * c, 1), jnp.float32),
    )(sumsq.reshape(b * c, rpc), w1, w2)

    # One scale value per flattened row.
    scale_rows = jnp.broadcast_to(scale_bc.reshape(b * c, 1, 1),
                                  (b * c, rpc, 1)).reshape(total_rows, 1)

    # Pass 2: stream x again and apply the per-row scale in native dtype.
    def apply_kernel(x_ref, s_ref, o_ref):
        o_ref[...] = x_ref[...] * s_ref[...].astype(o_ref.dtype)

    return pl.pallas_call(
        apply_kernel,
        out_shape=jax.ShapeDtypeStruct(xf.shape, xf.dtype),
        grid=grid,
        in_specs=[pl.BlockSpec((rb, lb), lambda i, j: (i, j)),
                  pl.BlockSpec((rb, 1), lambda i, j: (i, 0))],
        out_specs=pl.BlockSpec((rb, lb), lambda i, j: (i, j)),
        compiler_params=pltpu.CompilerParams(
            dimension_semantics=("parallel", "parallel"),
            vmem_limit_bytes=int(min(vmem_cap,
                                     max(32 << 20,
                                         4 * xblock_bytes + (4 << 20))))),
    )(xf, scale_rows)


# ----------------------------------------------------------------------------
# Public wrapper
# ----------------------------------------------------------------------------

def ca_layer(x, w1, w2, *, target_block_bytes=None):
    """CALayer forward. x: (b, c, h, w, d); w1: (c//r, c); w2: (c, c//r)."""
    b, c, h, ww, d = x.shape
    inv_hw = 1.0 / float(h * ww)
    vmem_cap, two_cores, auto_target = _tpu_budget()
    if target_block_bytes is None:
        target_block_bytes = auto_target

    rpc, l = _choose_flatten(h, ww, d)        # lane-dense flatten of (h, w, d)
    total_rows = b * c * rpc
    xf = x.reshape(total_rows, l)
    itemsize = jnp.dtype(x.dtype).itemsize

    bpb = _choose_batches_per_block(b, c * rpc, l, itemsize,
                                    target_block_bytes, two_cores)
    if bpb is not None:
        out = _ca_layer_single_pass(xf, w1, w2, b=b, c=c, rpc=rpc, l=l,
                                    bpb=bpb, inv_hw=inv_hw, vmem_cap=vmem_cap)
    else:
        out = _ca_layer_two_pass(xf, w1, w2, b=b, c=c, rpc=rpc, l=l,
                                 inv_hw=inv_hw, vmem_cap=vmem_cap,
                                 target_block_bytes=target_block_bytes)
    return out.reshape(b, c, h, ww, d)


def ca_layer_ref(x, w1, w2):
    x_abs = jnp.sum(x * x, axis=-1)                    # (b, c, h, w)
    y = jnp.mean(x_abs, axis=(2, 3))                   # (b, c)
    y = jnp.maximum(y @ w1.T, 0.0)
    y = jax.nn.sigmoid(y @ w2.T)
    return x * y[:, :, None, None, None]


if __name__ == "__main__":
    B, C, H, W, D = 4, 4, 16, 16, 8
    reduction = 2
    Cr = C // reduction

    key = jax.random.PRNGKey(0)
    kx, k1, k2 = jax.random.split(key, 3)
    x = jax.random.normal(kx, (B, C, H, W, D), dtype=jnp.float32)
    # Shapes from nn.Linear(channel, channel//r, bias=False) and its mirror.
    bound1 = 1.0 / np.sqrt(C)
    bound2 = 1.0 / np.sqrt(Cr)
    w1 = jax.random.uniform(k1, (Cr, C), jnp.float32, -bound1, bound1)
    w2 = jax.random.uniform(k2, (C, Cr), jnp.float32, -bound2, bound2)

    ref = ca_layer_ref(x, w1, w2)

    # Fused single-pass path (block budget derived from the TPU generation).
    out = jax.block_until_ready(ca_layer(x, w1, w2))
    np.testing.assert_allclose(np.asarray(out), np.asarray(ref),
                               rtol=1e-5, atol=1e-5)

    # Force the two-pass fallback (pretend one batch exceeds the block budget)
    # so the oversized-shape path is also compiled and verified.
    out2 = jax.block_until_ready(
        ca_layer(x, w1, w2, target_block_bytes=16 << 10))
    np.testing.assert_allclose(np.asarray(out2), np.asarray(ref),
                               rtol=1e-5, atol=1e-5)

    print("KERNEL_OK")
</pallas_src>

<mosaic_0001>
module attributes {stable_mosaic.version = 11 : i64} {
  func.func @kernel(%arg0: i32, %arg1: memref<8x2048xf32, #tpu.memory_space<vmem>>, %arg2: memref<2x4xf32, #tpu.memory_space<vmem>>, %arg3: memref<4x2xf32, #tpu.memory_space<vmem>>, %arg4: memref<8x2048xf32, #tpu.memory_space<vmem>>) attributes {dimension_semantics = [#tpu.dimension_semantics<parallel>], iteration_bounds = array<i64: 2>, scalar_prefetch = 0 : i64, scratch_operands = 0 : i64, tpu.core_type = #tpu.core_type<tc>, window_params = [{transform_indices = @transform_0, window_bounds = array<i64: 8, 2048>}, {pipeline_mode = #tpu.pipeline_mode<synchronous>, transform_indices = @transform_1, window_bounds = array<i64: 2, 4>}, {pipeline_mode = #tpu.pipeline_mode<synchronous>, transform_indices = @transform_2, window_bounds = array<i64: 4, 2>}, {transform_indices = @transform_3, window_bounds = array<i64: 8, 2048>}]} {
    %c0 = arith.constant 0 : index
    %c0_0 = arith.constant 0 : index
    %0 = vector.load %arg1[%c0, %c0_0] : memref<8x2048xf32, #tpu.memory_space<vmem>>, vector<8x2048xf32>
    %1 = arith.mulf %0, %0 : vector<8x2048xf32>
    %cst = arith.constant dense<0.000000e+00> : vector<8xf32>
    %2 = vector.multi_reduction <add>, %1, %cst [1] : vector<8x2048xf32> to vector<8xf32>
    %3 = vector.shape_cast %2 : vector<8xf32> to vector<8x1xf32>
    %4 = vector.shape_cast %3 : vector<8x1xf32> to vector<2x4xf32>
    %cst_1 = arith.constant 3.906250e-03 : f32
    %5 = vector.broadcast %cst_1 : f32 to vector<2x4xf32>
    %6 = arith.mulf %4, %5 : vector<2x4xf32>
    %c0_2 = arith.constant 0 : index
    %c0_3 = arith.constant 0 : index
    %7 = vector.load %arg2[%c0_2, %c0_3] : memref<2x4xf32, #tpu.memory_space<vmem>>, vector<2x4xf32>
    %c0_4 = arith.constant 0 : index
    %c0_5 = arith.constant 0 : index
    %8 = vector.load %arg3[%c0_4, %c0_5] : memref<4x2xf32, #tpu.memory_space<vmem>>, vector<4x2xf32>
    %9 = vector.shape_cast %6 : vector<2x4xf32> to vector<2x1x4xf32>
    %10 = vector.shape_cast %7 : vector<2x4xf32> to vector<1x2x4xf32>
    %11 = vector.broadcast %9 : vector<2x1x4xf32> to vector<2x2x4xf32>
    %12 = vector.broadcast %10 : vector<1x2x4xf32> to vector<2x2x4xf32>
    %13 = arith.mulf %11, %12 : vector<2x2x4xf32>
    %cst_6 = arith.constant dense<0.000000e+00> : vector<2x2xf32>
    %14 = vector.multi_reduction <add>, %13, %cst_6 [2] : vector<2x2x4xf32> to vector<2x2xf32>
    %cst_7 = arith.constant 0.000000e+00 : f32
    %15 = vector.broadcast %cst_7 : f32 to vector<2x2xf32>
    %16 = arith.maximumf %14, %15 : vector<2x2xf32>
    %17 = vector.shape_cast %16 : vector<2x2xf32> to vector<2x1x2xf32>
    %18 = vector.shape_cast %8 : vector<4x2xf32> to vector<1x4x2xf32>
    %19 = vector.broadcast %17 : vector<2x1x2xf32> to vector<2x4x2xf32>
    %20 = vector.broadcast %18 : vector<1x4x2xf32> to vector<2x4x2xf32>
    %21 = arith.mulf %19, %20 : vector<2x4x2xf32>
    %cst_8 = arith.constant dense<0.000000e+00> : vector<2x4xf32>
    %22 = vector.multi_reduction <add>, %21, %cst_8 [2] : vector<2x4x2xf32> to vector<2x4xf32>
    %23 = arith.negf %22 : vector<2x4xf32>
    %24 = math.exp %23 : vector<2x4xf32>
    %cst_9 = arith.constant 1.000000e+00 : f32
    %25 = vector.broadcast %cst_9 : f32 to vector<2x4xf32>
    %26 = arith.addf %25, %24 : vector<2x4xf32>
    %27 = arith.divf %25, %26 : vector<2x4xf32>
    %28 = vector.shape_cast %27 : vector<2x4xf32> to vector<8x1xf32>
    %c0_10 = arith.constant 0 : index
    %c0_11 = arith.constant 0 : index
    %29 = vector.load %arg1[%c0_10, %c0_11] : memref<8x2048xf32, #tpu.memory_space<vmem>>, vector<8x2048xf32>
    %30 = vector.broadcast %28 : vector<8x1xf32> to vector<8x2048xf32>
    %31 = arith.mulf %29, %30 : vector<8x2048xf32>
    %c0_12 = arith.constant 0 : index
    %c0_13 = arith.constant 0 : index
    %32 = vector.load %arg4[%c0_12, %c0_13] : memref<8x2048xf32, #tpu.memory_space<vmem>>, vector<8x2048xf32>
    tpu.vector_store %arg4[%c0_12, %c0_13], %31 {strides = array<i32>} : memref<8x2048xf32, #tpu.memory_space<vmem>>, vector<8x2048xf32>,
    return
  }
  func.func @transform_0(%arg0: i32) -> (i32, i32) {
    %c0_i32 = arith.constant 0 : i32
    %c0_i32_0 = arith.constant 0 : i32
    return %arg0, %c0_i32 : i32, i32
  }
  func.func @transform_1(%arg0: i32) -> (i32, i32) {
    %c0_i32 = arith.constant 0 : i32
    %c0_i32_0 = arith.constant 0 : i32
    %c0_i32_1 = arith.constant 0 : i32
    return %c0_i32, %c0_i32_0 : i32, i32
  }
  func.func @transform_2(%arg0: i32) -> (i32, i32) {
    %c0_i32 = arith.constant 0 : i32
    %c0_i32_0 = arith.constant 0 : i32
    %c0_i32_1 = arith.constant 0 : i32
    return %c0_i32, %c0_i32_0 : i32, i32
  }
  func.func @transform_3(%arg0: i32) -> (i32, i32) {
    %c0_i32 = arith.constant 0 : i32
    %c0_i32_0 = arith.constant 0 : i32
    return %arg0, %c0_i32 : i32, i32
  }
}

</mosaic_0001>

<llo_original>
// kernel: tpu_custom_call.1
$region0: #{tpu_custom_call.1}
  #allocation0 [shape = 'u32[]', space=smem, size = 0x4, offset = 0x4, fixed_abs, tag = 'smem constant byte address 0x4 - core index']
  #allocation1 [shape = 'u32[144,128]{1,0:T(1,128)}', space=vmem, size = 0x12000, scoped, tag = 'internal scratch']
  %s0 = inlined_call_operand.hbm [shape: f32[16,2048], index: 0, kind: input, shape index: {}]
  %s1 = inlined_call_operand.vmem [shape: f32[2,4], index: 1, kind: input, shape index: {}]
  %s2 = inlined_call_operand.vmem [shape: f32[4,2], index: 2, kind: input, shape index: {}]
  %s3 = inlined_call_operand.hbm [shape: f32[16,2048], index: 3, kind: output, shape index: {}]
  %s4 = sld [smem:[#allocation0]]
  $region49: #{tpu_custom_call.1} parent=0
    _
  %s6 = ssub.s32 1, %s4
  %s7 = scalar_select 0, %s6, %s4
  $region1: #{tpu_custom_call.1} parent=0
    #allocation2 [shape = 'u8[131072]{0}', space=vmem, size = 0x20000, scoped, tag = 'input window, operand 0']
    #allocation3 [shape = 's32[2]{0}', space=sflag, size = 0x8, scoped, tag = 'scoped memory for tpu_custom_call.1']
    #allocation4 [shape = 's32[2]{0}', space=sflag, size = 0x8, scoped, tag = 'scoped memory for tpu_custom_call.1']
    #allocation5 [shape = 'u8[131072]{0}', space=vmem, size = 0x20000, scoped, tag = 'output window, operand 0']
    %8 = vsyncpa [#allocation3], 0
    %s9 = scalar_lea.sflag [#allocation3], 1
    %10 = vsyncpa %s9, 0
    %11 = vsyncpa [#allocation4], 0
    %s12 = scalar_lea.sflag [#allocation4], 1
    %13 = vsyncpa %s12, 0
    loop: start=0, step=1, limit=4
    $region2: #{tpu_custom_call.1} parent=1 // loop_pre_header
      _
    $region3: #{tpu_custom_call.1} parent=1 // loop_header
      %s15 = sphi 0, %s19
      %p16 = scmp.ge.s32.totalorder %s15, 4
      %s25 = sphi 0, %s27
      %s28 = sphi 0, %s25
      %s29 = sphi 0, %s28
      %s45 = sphi 0, %s29
      %s49 = sphi 0, %s49
      %s51 = sphi 0, %s49
      %s52 = sphi 0, %s51
      %s66 = sphi 0, %s52
      %s70 = sphi 0, %s70
      %s72 = sphi 0, %s70
      %s73 = sphi 0, %s72
      %s87 = sphi 0, %s73
      %s93 = sphi 0, %s95
      %s96 = sphi 0, %s93
      %s97 = sphi 0, %s96
      %s113 = sphi 0, %s97
    $region4: #{tpu_custom_call.1} parent=1 // loop_header_branch
      %18 = sbr.rel (%p16) target = $region8
    $region5: #{tpu_custom_call.1} parent=1 // loop_body
      %s20 = ssub.s32 %s15, 1
      %s21 = ssub.s32 %s15, 2
      %s22 = sadd.s32 %s15, 1
      %s23 = ssub.s32 %s15, %s22
      %p24 = scmp.eq.s32.totalorder %s23, 0
      %s26 = sadd.s32 %s25, 1
      %s27 = scalar_select %p24, %s25, %s26
      %p30 = pneg %p24
      %p31 = scmp.eq.s32.totalorder %s15, 1
      %p32 = por %p30, %p31
      %p33 = scmp.ne.s32.totalorder %s25, %s28
      %p34 = scmp.eq.s32.totalorder %s15, 0
      %p35 = por %p33, %p34
      %p36 = scmp.ne.s32.totalorder %s25, %s28
      %p37 = scmp.eq.s32.totalorder %s20, 1
      %p38 = por %p36, %p37
      %p39 = scmp.ne.s32.totalorder %s28, %s29
      %p40 = scmp.eq.s32.totalorder %s20, 0
      %p41 = por %p39, %p40
      %p42 = scmp.ne.s32.totalorder %s28, %s29
      %p43 = scmp.eq.s32.totalorder %s21, 1
      %p44 = por %p42, %p43
      %p46 = scmp.ne.s32.totalorder %s29, %s45
      %p47 = scmp.eq.s32.totalorder %s21, 0
      %p48 = por %p46, %p47
      %s50 = sadd.s32 %s49, 1
      %p53 = scmp.eq.s32.totalorder %s15, 1
      %p54 = scmp.ne.s32.totalorder %s49, %s51
      %p55 = scmp.eq.s32.totalorder %s15, 0
      %p56 = por %p54, %p55
      %p57 = scmp.ne.s32.totalorder %s49, %s51
      %p58 = scmp.eq.s32.totalorder %s20, 1
      %p59 = por %p57, %p58
      %p60 = scmp.ne.s32.totalorder %s51, %s52
      %p61 = scmp.eq.s32.totalorder %s20, 0
      %p62 = por %p60, %p61
      %p63 = scmp.ne.s32.totalorder %s51, %s52
      %p64 = scmp.eq.s32.totalorder %s21, 1
      %p65 = por %p63, %p64
      %p67 = scmp.ne.s32.totalorder %s52, %s66
      %p68 = scmp.eq.s32.totalorder %s21, 0
      %p69 = por %p67, %p68
      %s71 = sadd.s32 %s70, 1
      %p74 = scmp.eq.s32.totalorder %s15, 1
      %p75 = scmp.ne.s32.totalorder %s70, %s72
      %p76 = scmp.eq.s32.totalorder %s15, 0
      %p77 = por %p75, %p76
      %p78 = scmp.ne.s32.totalorder %s70, %s72
      %p79 = scmp.eq.s32.totalorder %s20, 1
      %p80 = por %p78, %p79
      %p81 = scmp.ne.s32.totalorder %s72, %s73
      %p82 = scmp.eq.s32.totalorder %s20, 0
      %p83 = por %p81, %p82
      %p84 = scmp.ne.s32.totalorder %s72, %s73
      %p85 = scmp.eq.s32.totalorder %s21, 1
      %p86 = por %p84, %p85
      %p88 = scmp.ne.s32.totalorder %s73, %s87
      %p89 = scmp.eq.s32.totalorder %s21, 0
      %p90 = por %p88, %p89
      %s91 = ssub.s32 %s15, %s22
      %p92 = scmp.eq.s32.totalorder %s91, 0
      %s94 = sadd.s32 %s93, 1
      %s95 = scalar_select %p92, %s93, %s94
      %p98 = pneg %p92
      %p99 = scmp.eq.s32.totalorder %s15, 1
      %p100 = por %p98, %p99
      %p101 = scmp.ne.s32.totalorder %s93, %s96
      %p102 = scmp.eq.s32.totalorder %s15, 0
      %p103 = por %p101, %p102
      %p104 = scmp.ne.s32.totalorder %s93, %s96
      %p105 = scmp.eq.s32.totalorder %s20, 1
      %p106 = por %p104, %p105
      %p107 = scmp.ne.s32.totalorder %s96, %s97
      %p108 = scmp.eq.s32.totalorder %s20, 0
      %p109 = por %p107, %p108
      %p110 = scmp.ne.s32.totalorder %s96, %s97
      %p111 = scmp.eq.s32.totalorder %s21, 1
      %p112 = por %p110, %p111
      %p114 = scmp.ne.s32.totalorder %s97, %s113
      %p115 = scmp.eq.s32.totalorder %s21, 0
      %p116 = por %p114, %p115
      %p117 = scmp.le.s32.totalorder 1, %s15
      %p118 = scmp.lt.s32.totalorder %s15, 3
      %p119 = pnand %p117, %p118
      %p120 = pneg %p119
      // Predicated region
      $region9: #{tpu_custom_call.1} parent=5 // pred_check
        _
      $region10: #{tpu_custom_call.1} parent=5 // pred_check_branch
        %122 = sbr.rel (%p119) target = $region12
      $region11: #{tpu_custom_call.1} parent=5 // pred_region
        %s123 = ssub.s32 %s15, 1
        // Predicated region
        $region13: #{tpu_custom_call.1} parent=11 // pred_check
          %p124 = pneg %p62
        $region14: #{tpu_custom_call.1} parent=11 // pred_check_branch
          %126 = sbr.rel (%p124) target = $region16
        $region15: #{tpu_custom_call.1} parent=11 // pred_region
          _
        $region16: #{tpu_custom_call.1} parent=11 // pred_fallthru
          _
        // Predicated region
        $region17: #{tpu_custom_call.1} parent=11 // pred_check
          %p127 = pneg %p83
        $region18: #{tpu_custom_call.1} parent=11 // pred_check_branch
          %129 = sbr.rel (%p127) target = $region20
        $region19: #{tpu_custom_call.1} parent=11 // pred_region
          _
        $region20: #{tpu_custom_call.1} parent=11 // pred_fallthru
          _
      $region12: #{tpu_custom_call.1} parent=5 // pred_fallthru
        _
      %p130 = scmp.lt.s32.totalorder %s15, 2
      // Predicated region
      $region21: #{tpu_custom_call.1} parent=5 // pred_check
        %p131 = pneg %p130
      $region22: #{tpu_custom_call.1} parent=5 // pred_check_branch
        %133 = sbr.rel (%p131) target = $region24
      $region23: #{tpu_custom_call.1} parent=5 // pred_region
        // Predicated region
        $region25: #{tpu_custom_call.1} parent=23 // pred_check
          %p134 = pneg %p35
        $region26: #{tpu_custom_call.1} parent=23 // pred_check_branch
          %136 = sbr.rel (%p134) target = $region28
        $region27: #{tpu_custom_call.1} parent=23 // pred_region
          %s137 = sand.u32 %s25, 1
          %s138 = scalar_lea.sflag [#allocation3], %s137
          %s139 = sand.u32 %s25, 1
          %s140 = smul.addr %s139, 128
          %s141 = scalar_lea.vmem [#allocation2], %s140
          %s143 = ssub.s32 2048, 2048
          %144 = vsyncadd %s138, %s143
          %s145 = smul.addr %s15, 16
          %s146 = smul.addr %s145, 128
          %s147 = scalar_lea.hbm %s0, %s146
          %s149 = sshll.u32 %s141, 4
          %s150 = int_to_ptr.vmem [resolvable:$true] %s149
          %152 = dma.hbm_to_vmem [thread:$0]  %s147, 2048, %s150, %s138
        $region28: #{tpu_custom_call.1} parent=23 // pred_fallthru
          _
      $region24: #{tpu_custom_call.1} parent=5 // pred_fallthru
        _
      %p153 = scmp.le.s32.totalorder 1, %s15
      %p154 = scmp.lt.s32.totalorder %s15, 3
      %p155 = pnand %p153, %p154
      %p156 = pneg %p155
      // Predicated region
      $region29: #{tpu_custom_call.1} parent=5 // pred_check
        _
      $region30: #{tpu_custom_call.1} parent=5 // pred_check_branch
        %158 = sbr.rel (%p155) target = $region32
      $region31: #{tpu_custom_call.1} parent=5 // pred_region
        %s159 = ssub.s32 %s15, 1
        %s160 = sand.u32 %s28, 1
        %s161 = scalar_lea.sflag [#allocation3], %s160
        %s162 = sand.u32 %s28, 1
        %s163 = smul.addr %s162, 128
        %s164 = scalar_lea.vmem [#allocation2], %s163
        // Predicated region
        $region33: #{tpu_custom_call.1} parent=31 // pred_check
          %p165 = pneg %p41
        $region34: #{tpu_custom_call.1} parent=31 // pred_check_branch
          %167 = sbr.rel (%p165) target = $region36
        $region35: #{tpu_custom_call.1} parent=31 // pred_region
          %168 = dma.done %s161, 2048
        $region36: #{tpu_custom_call.1} parent=31 // pred_fallthru
          _
        %s169 = sand.u32 %s28, 1
        %s170 = scalar_lea.sflag [#allocation3], %s169
        %s171 = sand.u32 %s28, 1
        %s172 = smul.addr %s171, 128
        %s173 = scalar_lea.vmem [#allocation2], %s172
        %p174 = pneg %p41
        %p175 = pneg %p38
        %p176 = pneg %p62
        %p177 = pneg %p59
        %p178 = pneg %p83
        %p179 = pneg %p80
        %p180 = pneg %p109
        %p181 = pneg %p106
        %s182 = sand.u32 %s96, 1
        %s183 = scalar_lea.sflag [#allocation4], %s182
        %s184 = sand.u32 %s96, 1
        %s185 = smul.addr %s184, 128
        %s186 = scalar_lea.vmem [#allocation5], %s185
        %v187 = vld [vmem:[%s164] sm:$0xff]
        %v188 = vld [vmem:[%s164 + $0x8] sm:$0xff]
        %v189 = vld [vmem:[%s164 + $0x10] sm:$0xff]
        %v190 = vld [vmem:[%s164 + $0x18] sm:$0xff]
        %v191 = vld [vmem:[%s164 + $0x20] sm:$0xff]
        %v192 = vld [vmem:[%s164 + $0x28] sm:$0xff]
        %v193 = vld [vmem:[%s164 + $0x30] sm:$0xff]
        %v194 = vld [vmem:[%s164 + $0x38] sm:$0xff]
        %v195 = vld [vmem:[%s164 + $0x40] sm:$0xff]
        %v196 = vld [vmem:[%s164 + $0x48] sm:$0xff]
        %v197 = vld [vmem:[%s164 + $0x50] sm:$0xff]
        %v198 = vld [vmem:[%s164 + $0x58] sm:$0xff]
        %v199 = vld [vmem:[%s164 + $0x60] sm:$0xff]
        %v200 = vld [vmem:[%s164 + $0x68] sm:$0xff]
        %v201 = vld [vmem:[%s164 + $0x70] sm:$0xff]
        %v202 = vld [vmem:[%s164 + $0x78] sm:$0xff]
        %v203 = vmul.f32 %v187, %v187
        %v204 = vmul.f32 %v188, %v188
        %v205 = vmul.f32 %v189, %v189
        %v206 = vmul.f32 %v190, %v190
        %v207 = vmul.f32 %v191, %v191
        %v208 = vmul.f32 %v192, %v192
        %v209 = vmul.f32 %v193, %v193
        %v210 = vmul.f32 %v194, %v194
        %v211 = vmul.f32 %v195, %v195
        %v212 = vmul.f32 %v196, %v196
        %v213 = vmul.f32 %v197, %v197
        %v214 = vmul.f32 %v198, %v198
        %v215 = vmul.f32 %v199, %v199
        %v216 = vmul.f32 %v200, %v200
        %v217 = vmul.f32 %v201, %v201
        %v218 = vmul.f32 %v202, %v202
        %v219 = vadd.f32 %v203, %v204
        %v220 = vadd.f32 %v219, %v205
        %v221 = vadd.f32 %v220, %v206
        %v222 = vadd.f32 %v221, %v207
        %v223 = vadd.f32 %v222, %v208
        %v224 = vadd.f32 %v223, %v209
        %v225 = vadd.f32 %v224, %v210
        %v226 = vadd.f32 %v225, %v211
        %v227 = vadd.f32 %v226, %v212
        %v228 = vadd.f32 %v227, %v213
        %v229 = vadd.f32 %v228, %v214
        %v230 = vadd.f32 %v229, %v215
        %v231 = vadd.f32 %v230, %v216
        %v232 = vadd.f32 %v231, %v217
        %v233 = vadd.f32 %v232, %v218
        %234 = vadd.xlane.f32.xlu0 %v233
        %v235 = vpop.xlane.xlu0 %234
        %v238 = vunpack.c.l.s4 839922192
        %v239 = vunpack.c.0.s8 %v238
        %v240 = vlaneseq
        %v241 = vshrl.u32 %v240, 7
        %v242 = vsub.s32 %v239, %v241
        %v243 = vrot.slane %v235, %v242
        %v245 = vunpack.c.l.s4 1985246804
        %v246 = vunpack.c.0.s8 %v245
        %v247 = vlaneseq
        %v248 = vshrl.u32 %v247, 7
        %v249 = vsub.s32 %v246, %v248
        %v250 = vrot.slane %v235, %v249
        %v253 = vmul.f32 %v243, 0.00390625
        %v254 = vmul.f32 %v250, 0.00390625
        %v255 = vld [vmem:[%s1] sm:$0x3]
        %v256 = vld [vmem:[%s2] sm:$0xf]
        %v258 = vlaneseq
        %v259 = vshrl.u32 %v258, 7
        %v260 = vsub.s32 0, %v259
        %v261 = vrot.slane %v255, %v260
        %263 = vbcast.lane.b32.xlu0 %v261, 256
        %v264 = vpop.permute.xlu0 %263
        %v265 = vlaneseq
        %v266 = vshrl.u32 %v265, 7
        %v267 = vsub.s32 1, %v266
        %v268 = vrot.slane %v255, %v267
        %270 = vbcast.lane.b32.xlu0 %v268, 256
        %v271 = vpop.permute.xlu0 %270
        %v274 = vmul.f32 %v253, %v264
        %v275 = vmul.f32 %v253, %v271
        %v276 = vmul.f32 %v254, %v264
        %v277 = vmul.f32 %v254, %v271
        %282 = vset.pattern.permute.xlu0 0
        %283 = vperm.xlu0 %282, %v274
        %v284 = vpop.permute.xlu0 %283
        %285 = vset.pattern.permute.xlu0 0
        %286 = vperm.xlu0 %285, %v275
        %v287 = vpop.permute.xlu0 %286
        %288 = vset.pattern.permute.xlu0 0
        %289 = vperm.xlu0 %288, %v276
        %v290 = vpop.permute.xlu0 %289
        %291 = vset.pattern.permute.xlu0 0
        %292 = vperm.xlu0 %291, %v277
        %v293 = vpop.permute.xlu0 %292
        %v294 = vlaneseq
        %v295 = vand.u32 %v294, 127
        %v296 = vlaneseq
        %v297 = vshrl.u32 %v296, 7
        %v298 = vsub.s32 %v295, %v297
        %v299 = vrot.slane %v284, %v298
        %v300 = vlaneseq
        %v301 = vshrl.u32 %v300, 7
        %v302 = vsub.s32 %v295, %v301
        %v303 = vrot.slane %v287, %v302
        %v304 = vlaneseq
        %v305 = vshrl.u32 %v304, 7
        %v306 = vsub.s32 %v295, %v305
        %v307 = vrot.slane %v290, %v306
        %v308 = vlaneseq
        %v309 = vshrl.u32 %v308, 7
        %v310 = vsub.s32 %v295, %v309
        %v311 = vrot.slane %v293, %v310
        %vm312 = vcmask 1041409
        %v313 = vsel %vm312, %v303, %v299
        %v314 = vsel %vm312, %v311, %v307
        %vm317 = vcmask 25600
        %v318 = vsel %vm317, %v313, 0.0
        %319 = vadd.xlane.f32.xlu0 %v318
        %v320 = vpop.xlane.xlu0 %319
        %v321 = vsel %vm317, %v314, 0.0
        %322 = vadd.xlane.f32.xlu0 %v321
        %v323 = vpop.xlane.xlu0 %322
        %v324 = vmax.f32 %v320, 0.0
        %v325 = vmax.f32 %v323, 0.0
        %v327 = vlaneseq
        %v328 = vshrl.u32 %v327, 7
        %v329 = vsub.s32 0, %v328
        %v330 = vrot.slane %v256, %v329
        %332 = vbcast.lane.b32.xlu0 %v330, 256
        %v333 = vpop.permute.xlu0 %332
        %v334 = vlaneseq
        %v335 = vshrl.u32 %v334, 7
        %v336 = vsub.s32 1, %v335
        %v337 = vrot.slane %v256, %v336
        %339 = vbcast.lane.b32.xlu0 %v337, 256
        %v340 = vpop.permute.xlu0 %339
        %v341 = vlaneseq
        %v342 = vshrl.u32 %v341, 7
        %v343 = vsub.s32 2, %v342
        %v344 = vrot.slane %v256, %v343
        %346 = vbcast.lane.b32.xlu0 %v344, 256
        %v347 = vpop.permute.xlu0 %346
        %v348 = vlaneseq
        %v349 = vshrl.u32 %v348, 7
        %v350 = vsub.s32 3, %v349
        %v351 = vrot.slane %v256, %v350
        %353 = vbcast.lane.b32.xlu0 %v351, 256
        %v354 = vpop.permute.xlu0 %353
        %v359 = vmul.f32 %v324, %v333
        %v360 = vmul.f32 %v324, %v340
        %v361 = vmul.f32 %v324, %v347
        %v362 = vmul.f32 %v324, %v354
        %v363 = vmul.f32 %v325, %v333
        %v364 = vmul.f32 %v325, %v340
        %v365 = vmul.f32 %v325, %v347
        %v366 = vmul.f32 %v325, %v354
        %375 = vset.pattern.permute.xlu0 0
        %376 = vperm.xlu0 %375, %v359
        %v377 = vpop.permute.xlu0 %376
        %378 = vset.pattern.permute.xlu0 0
        %379 = vperm.xlu0 %378, %v360
        %v380 = vpop.permute.xlu0 %379
        %381 = vset.pattern.permute.xlu0 0
        %382 = vperm.xlu0 %381, %v361
        %v383 = vpop.permute.xlu0 %382
        %384 = vset.pattern.permute.xlu0 0
        %385 = vperm.xlu0 %384, %v362
        %v386 = vpop.permute.xlu0 %385
        %387 = vset.pattern.permute.xlu0 0
        %388 = vperm.xlu0 %387, %v363
        %v389 = vpop.permute.xlu0 %388
        %390 = vset.pattern.permute.xlu0 0
        %391 = vperm.xlu0 %390, %v364
        %v392 = vpop.permute.xlu0 %391
        %393 = vset.pattern.permute.xlu0 0
        %394 = vperm.xlu0 %393, %v365
        %v395 = vpop.permute.xlu0 %394
        %396 = vset.pattern.permute.xlu0 0
        %397 = vperm.xlu0 %396, %v366
        %v398 = vpop.permute.xlu0 %397
        %v399 = vlaneseq
        %v400 = vshrl.u32 %v399, 7
        %v401 = vsub.s32 %v295, %v400
        %v402 = vrot.slane %v377, %v401
        %v403 = vlaneseq
        %v404 = vshrl.u32 %v403, 7
        %v405 = vsub.s32 %v295, %v404
        %v406 = vrot.slane %v380, %v405
        %v407 = vlaneseq
        %v408 = vshrl.u32 %v407, 7
        %v409 = vsub.s32 %v295, %v408
        %v410 = vrot.slane %v383, %v409
        %v411 = vlaneseq
        %v412 = vshrl.u32 %v411, 7
        %v413 = vsub.s32 %v295, %v412
        %v414 = vrot.slane %v386, %v413
        %v415 = vlaneseq
        %v416 = vshrl.u32 %v415, 7
        %v417 = vsub.s32 %v295, %v416
        %v418 = vrot.slane %v389, %v417
        %v419 = vlaneseq
        %v420 = vshrl.u32 %v419, 7
        %v421 = vsub.s32 %v295, %v420
        %v422 = vrot.slane %v392, %v421
        %v423 = vlaneseq
        %v424 = vshrl.u32 %v423, 7
        %v425 = vsub.s32 %v295, %v424
        %v426 = vrot.slane %v395, %v425
        %v427 = vlaneseq
        %v428 = vshrl.u32 %v427, 7
        %v429 = vsub.s32 %v295, %v428
        %v430 = vrot.slane %v398, %v429
        %v431 = vsel %vm312, %v406, %v402
        %vm432 = vcmask 1042434
        %v433 = vsel %vm432, %v410, %v431
        %vm434 = vcmask 1043459
        %v435 = vsel %vm434, %v414, %v433
        %v436 = vsel %vm312, %v422, %v418
        %v437 = vsel %vm432, %v426, %v436
        %v438 = vsel %vm434, %v430, %v437
        %vm441 = vcmask 11264
        %v442 = vsel %vm441, %v435, 0.0
        %443 = vadd.xlane.f32.xlu0 %v442
        %v444 = vpop.xlane.xlu0 %443
        %v445 = vsel %vm441, %v438, 0.0
        %446 = vadd.xlane.f32.xlu0 %v445
        %v447 = vpop.xlane.xlu0 %446
        %v448 = vxor.u32 %v444, 2147483648
        %v449 = vxor.u32 %v447, 2147483648
        %v450 = vmul.f32 %v448, 1.442695
        %v451 = vpow.pop %v450
        %v452 = vmul.f32 %v449, 1.442695
        %v453 = vpow.pop %v452
        %v454 = vadd.f32 %v451, 1.0
        %v455 = vadd.f32 %v453, 1.0
        %v456 = vrcp.pop %v454
        %v457 = vmul.f32 1.0, %v456
        %v458 = vrcp.pop %v455
        %v459 = vmul.f32 1.0, %v458
        %v462 = vcombine.low %v457, %v459
        %v463 = vcombine.high %v457, %v459
        %v466 = vmul.f32 %v187, %v462
        %v467 = vmul.f32 %v188, %v463
        %v468 = vmul.f32 %v189, %v462
        %v469 = vmul.f32 %v190, %v463
        %v470 = vmul.f32 %v191, %v462
        %v471 = vmul.f32 %v192, %v463
        %v472 = vmul.f32 %v193, %v462
        %v473 = vmul.f32 %v194, %v463
        %v474 = vmul.f32 %v195, %v462
        %v475 = vmul.f32 %v196, %v463
        %v476 = vmul.f32 %v197, %v462
        %v477 = vmul.f32 %v198, %v463
        %v478 = vmul.f32 %v199, %v462
        %v479 = vmul.f32 %v200, %v463
        %v480 = vmul.f32 %v201, %v462
        %v481 = vmul.f32 %v202, %v463
        %482 = vst [vmem:[%s186] sm:$0xff] %v466
        %483 = vst [vmem:[%s186 + $0x8] sm:$0xff] %v467
        %484 = vst [vmem:[%s186 + $0x10] sm:$0xff] %v468
        %485 = vst [vmem:[%s186 + $0x18] sm:$0xff] %v469
        %486 = vst [vmem:[%s186 + $0x20] sm:$0xff] %v470
        %487 = vst [vmem:[%s186 + $0x28] sm:$0xff] %v471
        %488 = vst [vmem:[%s186 + $0x30] sm:$0xff] %v472
        %489 = vst [vmem:[%s186 + $0x38] sm:$0xff] %v473
        %490 = vst [vmem:[%s186 + $0x40] sm:$0xff] %v474
        %491 = vst [vmem:[%s186 + $0x48] sm:$0xff] %v475
        %492 = vst [vmem:[%s186 + $0x50] sm:$0xff] %v476
        %493 = vst [vmem:[%s186 + $0x58] sm:$0xff] %v477
        %494 = vst [vmem:[%s186 + $0x60] sm:$0xff] %v478
        %495 = vst [vmem:[%s186 + $0x68] sm:$0xff] %v479
        %496 = vst [vmem:[%s186 + $0x70] sm:$0xff] %v480
        %497 = vst [vmem:[%s186 + $0x78] sm:$0xff] %v481
        %s498 = sand.u32 %s96, 1
        %s499 = scalar_lea.sflag [#allocation4], %s498
        %s500 = sand.u32 %s96, 1
        %s501 = smul.addr %s500, 128
        %s502 = scalar_lea.vmem [#allocation5], %s501
        // Predicated region
        $region37: #{tpu_custom_call.1} parent=31 // pred_check
          %p503 = pneg %p106
        $region38: #{tpu_custom_call.1} parent=31 // pred_check_branch
          %505 = sbr.rel (%p503) target = $region40
        $region39: #{tpu_custom_call.1} parent=31 // pred_region
          %s507 = ssub.s32 2048, 2048
          %508 = vsyncadd %s499, %s507
          %s509 = smul.addr %s20, 16
          %s510 = smul.addr %s509, 128
          %s511 = scalar_lea.hbm %s3, %s510
          %s513 = sshll.u32 %s502, 4
          %s514 = int_to_ptr.vmem [resolvable:$true] %s513
          %516 = dma.vmem_to_hbm [thread:$0]  %s514, 2048, %s511, %s499
        $region40: #{tpu_custom_call.1} parent=31 // pred_fallthru
          _
      $region32: #{tpu_custom_call.1} parent=5 // pred_fallthru
        _
      %p517 = scmp.le.s32.totalorder 2, %s15
      // Predicated region
      $region41: #{tpu_custom_call.1} parent=5 // pred_check
        %p518 = pneg %p517
      $region42: #{tpu_custom_call.1} parent=5 // pred_check_branch
        %520 = sbr.rel (%p518) target = $region44
      $region43: #{tpu_custom_call.1} parent=5 // pred_region
        %s521 = ssub.s32 %s15, 2
        // Predicated region
        $region45: #{tpu_custom_call.1} parent=43 // pred_check
          %p522 = pneg %p112
        $region46: #{tpu_custom_call.1} parent=43 // pred_check_branch
          %524 = sbr.rel (%p522) target = $region48
        $region47: #{tpu_custom_call.1} parent=43 // pred_region
          %s525 = sand.u32 %s97, 1
          %s526 = scalar_lea.sflag [#allocation4], %s525
          %s527 = sand.u32 %s97, 1
          %s528 = smul.addr %s527, 128
          %s529 = scalar_lea.vmem [#allocation5], %s528
          %530 = dma.done %s526, 2048
        $region48: #{tpu_custom_call.1} parent=43 // pred_fallthru
          _
      $region44: #{tpu_custom_call.1} parent=5 // pred_fallthru
        _
    $region6: #{tpu_custom_call.1} parent=1 // loop_footer
      %s19 = sadd.s32 1, %s15
    $region7: #{tpu_custom_call.1} parent=1 // loop_footer_branch
      %14 = sbr.rel target = $region3
    $region8: #{tpu_custom_call.1} parent=1 // loop_exit
      _
    %531 = vsyncpa [#allocation3], 1
    %s532 = scalar_lea.sflag [#allocation3], 1
    %533 = vsyncpa %s532, 1
    %534 = vsyncpa [#allocation4], 1
    %s535 = scalar_lea.sflag [#allocation4], 1
    %536 = vsyncpa %s535, 1

</llo_original>
